<compile_context>
chip_gen: v6e
topology: v6e:2x2x1
jax: 0.10.0
libtpu: 0.0.40
codegen_flags: <defaults>
</compile_context>

<pallas_src>
import jax
import jax.numpy as jnp
from jax.experimental import pallas as pl
from jax.experimental.pallas import tpu as pltpu

IN_CH = 4
NUM_CLASSES = 4
L_IN = 10              # input sequence length -> 128*1 after the conv/pool stack
K = 3                  # conv kernel size
L1 = L_IN - (K - 1)    # 8   positions after conv1
P1 = L1 // 2           # 4   positions after pool1
L2 = P1 - (K - 1)      # 2   positions after conv2 (pool2 -> 1, flatten -> 128)
C1, C2 = 64, 128
HID = 64
XW = L_IN * IN_CH      # 40  flattened sample width
N1 = L1 * C1           # 512 fused conv1 output width
N1H = P1 * C1          # 256 pool1 output width (= fused conv2 input width)
N2 = L2 * C2           # 256 fused conv2 output width


def _round_up(n, m):
    return ((n + m - 1) // m) * m


def _cnn1d_kernel(x_ref,             # (BT, 40)   bf16  raw sample, pos-major/ch-minor
                  w1_ref, t1_ref,    # (40, 512)  bf16 ; (1, 256) f32
                  w2_ref, t2_ref,    # (256, 256) bf16 ; (1, 128) f32
                  fw1_ref, fb1_ref,  # (128, 64)  bf16 ; (1, 64)  f32
                  fw2_ref, fb2_ref,  # (64, 128)  bf16 (zero-padded) ; (1, 128) f32
                  o_ref):            # (BT, 128)  bf16  (cols [0, NUM_CLASSES) valid)
    # conv1 (BN1 scale pre-folded) as a single (BT,40)@(40,512) MXU matmul.
    h1 = jnp.dot(x_ref[...], w1_ref[...], preferred_element_type=jnp.float32)
    # MaxPool1d(2) then +shift then ReLU (shift/ReLU commute with the positional max).
    p1 = jnp.maximum(jnp.maximum(h1[:, :N1H], h1[:, N1H:]) + t1_ref[...], 0.0)
    p1 = p1.astype(jnp.bfloat16)       # (BT, 256): pooled positions 0..3, ch-minor

    # conv2 (BN2 scale pre-folded) as one block-banded (BT,256)@(256,256) matmul.
    h2 = jnp.dot(p1, w2_ref[...], preferred_element_type=jnp.float32)
    # MaxPool1d(2) over the 2 output positions == flatten to (BT, 128).
    feat = jnp.maximum(jnp.maximum(h2[:, :C2], h2[:, C2:]) + t2_ref[...], 0.0)
    feat = feat.astype(jnp.bfloat16)

    # fc1 + ReLU  (Dropout(0.2) is identity at inference).
    z1 = jnp.maximum(
        jnp.dot(feat, fw1_ref[...], preferred_element_type=jnp.float32) + fb1_ref[...],
        0.0).astype(jnp.bfloat16)

    # fc2 as a lane-dense 128-wide slab (padded weight columns are zero).
    o_ref[...] = (jnp.dot(z1, fw2_ref[...], preferred_element_type=jnp.float32)
                  + fb2_ref[...]).astype(o_ref.dtype)


def _resident_spec(shape):
    """Full-array block, grid-invariant (weights stay resident in VMEM)."""
    return pl.BlockSpec(shape, lambda b: (0, 0))


def cnn1d_forward(x_ncl, params, *, block_b=1024):
    """x_ncl: (B, 4, 10) float32 (PyTorch NCL).  Returns (B, 4) float32 logits."""
    B = x_ncl.shape[0]
    # Batch tile: multiple of 8 sublanes, big enough to amortize per-grid-step
    # overhead, but capped so the grid has >= 2 parallel steps whenever B > 8
    # (keeps both v7x TensorCores busy; no-op on single-TC v5e/v6e).
    bt = min(block_b, max(8, _round_up(pl.cdiv(B, 2), 8)))
    Bp = _round_up(B, bt)

    # (B, 4, 10) NCL -> (B, 40) position-major / channel-minor slab (no im2col).
    x = jnp.transpose(x_ncl, (0, 2, 1)).reshape(B, XW).astype(jnp.bfloat16)
    if Bp != B:
        x = jnp.pad(x, ((0, Bp - B), (0, 0)))

    grid_spec = pltpu.PrefetchScalarGridSpec(
        num_scalar_prefetch=0,
        grid=(Bp // bt,),
        in_specs=[pl.BlockSpec((bt, XW), lambda b: (b, 0))]
                 + [_resident_spec(p.shape) for p in params],
        out_specs=pl.BlockSpec((bt, C2), lambda b: (b, 0)),
    )

    out = pl.pallas_call(
        _cnn1d_kernel,
        out_shape=jax.ShapeDtypeStruct((Bp, C2), jnp.bfloat16),
        grid_spec=grid_spec,
        compiler_params=pltpu.CompilerParams(
            dimension_semantics=("parallel",),
            vmem_limit_bytes=32 * 1024 * 1024),
    )(x, *params)
    return out[:B, :NUM_CLASSES].astype(jnp.float32)


def make_params(key):
    """Deterministic synthetic params matching the PyTorch module, re-laid-out for
    the fused kernel (BN folded for inference)."""
    ks = jax.random.split(key, 16)
    eps = 1e-5

    # PyTorch-shaped parameters.
    w1 = 0.2 * jax.random.normal(ks[0], (C1, IN_CH, K), jnp.float32)   # conv1.weight
    b1 = 0.1 * jax.random.normal(ks[1], (C1,), jnp.float32)
    g1 = 1.0 + 0.1 * jax.random.normal(ks[2], (C1,), jnp.float32)
    be1 = 0.1 * jax.random.normal(ks[3], (C1,), jnp.float32)
    m1 = 0.05 * jax.random.normal(ks[4], (C1,), jnp.float32)
    v1 = jax.random.uniform(ks[5], (C1,), jnp.float32, 0.5, 1.5)

    w2 = 0.1 * jax.random.normal(ks[6], (C2, C1, K), jnp.float32)      # conv2.weight
    b2 = 0.1 * jax.random.normal(ks[7], (C2,), jnp.float32)
    g2 = 1.0 + 0.1 * jax.random.normal(ks[8], (C2,), jnp.float32)
    be2 = 0.1 * jax.random.normal(ks[9], (C2,), jnp.float32)
    m2 = 0.05 * jax.random.normal(ks[10], (C2,), jnp.float32)
    v2 = jax.random.uniform(ks[11], (C2,), jnp.float32, 0.5, 1.5)

    fc1w = 0.1 * jax.random.normal(ks[12], (HID, C2), jnp.float32)     # (64, 128)
    fc1b = 0.1 * jax.random.normal(ks[13], (HID,), jnp.float32)
    fc2w = 0.1 * jax.random.normal(ks[14], (NUM_CLASSES, HID), jnp.float32)
    fc2b = 0.1 * jax.random.normal(ks[15], (NUM_CLASSES,), jnp.float32)

    # Eval-mode BN fold (in f32, cast to bf16 once): scale goes into the conv weights,
    # (bias - mean)*scale + beta stays as a per-channel post-pool shift.
    sc1 = g1 / jnp.sqrt(v1 + eps)
    sh1 = be1 + (b1 - m1) * sc1
    sc2 = g2 / jnp.sqrt(v2 + eps)
    sh2 = be2 + (b2 - m2) * sc2

    # conv1 im2col matrix (12, 64): row = tap*IN_CH + cin, BN1 scale folded.
    w1col = jnp.transpose(w1, (2, 1, 0)).reshape(K * IN_CH, C1) * sc1[None, :]
    # Block-structured conv1 weight (40, 512): output position p reads input rows
    # [4p, 4p+12); even p -> lane blocks 0..3, odd p -> blocks 4..7 so that
    # MaxPool1d(2) == max(out[:, :256], out[:, 256:]).
    W1 = jnp.zeros((XW, N1), jnp.float32)
    for p in range(L1):
        blk = p // 2 if p % 2 == 0 else P1 + p // 2
        W1 = W1.at[p * IN_CH:p * IN_CH + K * IN_CH, blk * C1:(blk + 1) * C1].set(w1col)
    T1 = jnp.tile(sh1, P1).reshape(1, N1H)                             # (1, 256)

    # conv2 per-tap, channels-last, BN2 scale folded: (3, 64, 128).
    w2t = jnp.transpose(w2, (2, 1, 0)) * sc2[None, None, :]
    # Block-banded conv2 weight (256, 256): rows = pooled positions 0..3 (64 ch each),
    # cols = output positions 0..1 (128 ch each); pool2+flatten ==
    # max(out[:, :128], out[:, 128:]).
    W2 = jnp.zeros((N1H, N2), jnp.float32)
    for q in range(L2):
        for t in range(K):
            W2 = W2.at[(q + t) * C1:(q + t + 1) * C1, q * C2:(q + 1) * C2].set(w2t[t])
    T2 = sh2.reshape(1, C2)

    # fc weights; fc2 zero-padded to a lane-dense 128-wide output slab.
    FW1 = fc1w.T                                                       # (128, 64)
    FB1 = fc1b.reshape(1, HID)
    FW2 = jnp.zeros((HID, C2), jnp.float32).at[:, :NUM_CLASSES].set(fc2w.T)
    FB2 = jnp.zeros((1, C2), jnp.float32).at[:, :NUM_CLASSES].set(fc2b[None, :])

    return (W1.astype(jnp.bfloat16), T1,
            W2.astype(jnp.bfloat16), T2,
            FW1.astype(jnp.bfloat16), FB1,
            FW2.astype(jnp.bfloat16), FB2)


def ref_forward(x_ncl, params):
    """Pure-JAX reference with identical math (bf16 MXU operands, f32 accumulation,
    BN folded for inference).  Parity with true-f32 PyTorch is ~1e-2, not bit-level."""
    W1, T1, W2, T2, FW1, FB1, FW2, FB2 = params
    B = x_ncl.shape[0]
    x = jnp.transpose(x_ncl, (0, 2, 1)).reshape(B, XW).astype(jnp.bfloat16)
    h1 = jnp.dot(x, W1, preferred_element_type=jnp.float32)
    p1 = jnp.maximum(jnp.maximum(h1[:, :N1H], h1[:, N1H:]) + T1, 0.0).astype(jnp.bfloat16)
    h2 = jnp.dot(p1, W2, preferred_element_type=jnp.float32)
    feat = jnp.maximum(jnp.maximum(h2[:, :C2], h2[:, C2:]) + T2, 0.0).astype(jnp.bfloat16)
    z1 = jnp.maximum(jnp.dot(feat, FW1, preferred_element_type=jnp.float32) + FB1,
                     0.0).astype(jnp.bfloat16)
    out = jnp.dot(z1, FW2, preferred_element_type=jnp.float32) + FB2
    return out[:, :NUM_CLASSES].astype(jnp.bfloat16).astype(jnp.float32)


if __name__ == "__main__":
    key = jax.random.PRNGKey(0)
    pkey, xkey, xkey2 = jax.random.split(key, 3)
    params = make_params(pkey)

    # Small shape implied by the module: (B=2, C=4, L=10) NCL.
    x_small = jax.random.normal(xkey, (2, IN_CH, L_IN), jnp.float32)
    out_small = jax.block_until_ready(cnn1d_forward(x_small, params))
    ref_small = jax.block_until_ready(ref_forward(x_small, params))
    assert out_small.shape == (2, NUM_CLASSES)
    assert jnp.allclose(out_small, ref_small, atol=1e-2, rtol=1e-2)

    # Larger batch exercising the batch-tiled grid (2 parallel tiles, with padding).
    x_big = jax.random.normal(xkey2, (1000, IN_CH, L_IN), jnp.float32)
    out_big = jax.block_until_ready(cnn1d_forward(x_big, params))
    ref_big = jax.block_until_ready(ref_forward(x_big, params))
    assert out_big.shape == (1000, NUM_CLASSES)
    assert jnp.allclose(out_big, ref_big, atol=1e-2, rtol=1e-2)

    print("KERNEL_OK")
</pallas_src>

<mosaic_0001>
module attributes {stable_mosaic.version = 11 : i64} {
  func.func @_cnn1d_kernel(%arg0: i32, %arg1: memref<8x40xbf16, #tpu.memory_space<vmem>>, %arg2: memref<40x512xbf16, #tpu.memory_space<vmem>>, %arg3: memref<1x256xf32, #tpu.memory_space<vmem>>, %arg4: memref<256x256xbf16, #tpu.memory_space<vmem>>, %arg5: memref<1x128xf32, #tpu.memory_space<vmem>>, %arg6: memref<128x64xbf16, #tpu.memory_space<vmem>>, %arg7: memref<1x64xf32, #tpu.memory_space<vmem>>, %arg8: memref<64x128xbf16, #tpu.memory_space<vmem>>, %arg9: memref<1x128xf32, #tpu.memory_space<vmem>>, %arg10: memref<8x128xbf16, #tpu.memory_space<vmem>>) attributes {dimension_semantics = [#tpu.dimension_semantics<parallel>], iteration_bounds = array<i64: 1>, scalar_prefetch = 0 : i64, scratch_operands = 0 : i64, tpu.core_type = #tpu.core_type<tc>, window_params = [{transform_indices = @transform_0, window_bounds = array<i64: 8, 40>}, {pipeline_mode = #tpu.pipeline_mode<synchronous>, transform_indices = @transform_1, window_bounds = array<i64: 40, 512>}, {pipeline_mode = #tpu.pipeline_mode<synchronous>, transform_indices = @transform_2, window_bounds = array<i64: 1, 256>}, {pipeline_mode = #tpu.pipeline_mode<synchronous>, transform_indices = @transform_3, window_bounds = array<i64: 256, 256>}, {pipeline_mode = #tpu.pipeline_mode<synchronous>, transform_indices = @transform_4, window_bounds = array<i64: 1, 128>}, {pipeline_mode = #tpu.pipeline_mode<synchronous>, transform_indices = @transform_5, window_bounds = array<i64: 128, 64>}, {pipeline_mode = #tpu.pipeline_mode<synchronous>, transform_indices = @transform_6, window_bounds = array<i64: 1, 64>}, {pipeline_mode = #tpu.pipeline_mode<synchronous>, transform_indices = @transform_7, window_bounds = array<i64: 64, 128>}, {pipeline_mode = #tpu.pipeline_mode<synchronous>, transform_indices = @transform_8, window_bounds = array<i64: 1, 128>}, {transform_indices = @transform_9, window_bounds = array<i64: 8, 128>}]} {
    %c0 = arith.constant 0 : index
    %c0_0 = arith.constant 0 : index
    %0 = vector.load %arg1[%c0, %c0_0] : memref<8x40xbf16, #tpu.memory_space<vmem>>, vector<8x40xbf16>
    %c0_1 = arith.constant 0 : index
    %c0_2 = arith.constant 0 : index
    %1 = vector.load %arg2[%c0_1, %c0_2] : memref<40x512xbf16, #tpu.memory_space<vmem>>, vector<40x512xbf16>
    %cst = arith.constant dense<0.000000e+00> : vector<8x512xf32>
    %2 = tpu.matmul %0, %1, %cst {dimension_numbers = #tpu.dot_dimension_numbers<[1], [0], [0], [1], [0, 0, 1, 1], [], []>} : vector<8x40xbf16>, vector<40x512xbf16>, vector<8x512xf32> -> vector<8x512xf32>
    %3 = vector.extract_strided_slice %2 {offsets = [0, 0], sizes = [8, 256], strides = [1, 1]} : vector<8x512xf32> to vector<8x256xf32>
    %4 = vector.extract_strided_slice %2 {offsets = [0, 256], sizes = [8, 256], strides = [1, 1]} : vector<8x512xf32> to vector<8x256xf32>
    %5 = arith.maximumf %3, %4 : vector<8x256xf32>
    %c0_3 = arith.constant 0 : index
    %c0_4 = arith.constant 0 : index
    %6 = vector.load %arg3[%c0_3, %c0_4] : memref<1x256xf32, #tpu.memory_space<vmem>>, vector<1x256xf32>
    %7 = vector.broadcast %6 : vector<1x256xf32> to vector<8x256xf32>
    %8 = arith.addf %5, %7 : vector<8x256xf32>
    %cst_5 = arith.constant 0.000000e+00 : f32
    %9 = vector.broadcast %cst_5 : f32 to vector<8x256xf32>
    %10 = arith.maximumf %8, %9 : vector<8x256xf32>
    %11 = arith.truncf %10 : vector<8x256xf32> to vector<8x256xbf16>
    %c0_6 = arith.constant 0 : index
    %c0_7 = arith.constant 0 : index
    %12 = vector.load %arg4[%c0_6, %c0_7] : memref<256x256xbf16, #tpu.memory_space<vmem>>, vector<256x256xbf16>
    %cst_8 = arith.constant dense<0.000000e+00> : vector<8x256xf32>
    %13 = tpu.matmul %11, %12, %cst_8 {dimension_numbers = #tpu.dot_dimension_numbers<[1], [0], [0], [1], [0, 0, 1, 1], [], []>} : vector<8x256xbf16>, vector<256x256xbf16>, vector<8x256xf32> -> vector<8x256xf32>
    %14 = vector.extract_strided_slice %13 {offsets = [0, 0], sizes = [8, 128], strides = [1, 1]} : vector<8x256xf32> to vector<8x128xf32>
    %15 = vector.extract_strided_slice %13 {offsets = [0, 128], sizes = [8, 128], strides = [1, 1]} : vector<8x256xf32> to vector<8x128xf32>
    %16 = arith.maximumf %14, %15 : vector<8x128xf32>
    %c0_9 = arith.constant 0 : index
    %c0_10 = arith.constant 0 : index
    %17 = vector.load %arg5[%c0_9, %c0_10] : memref<1x128xf32, #tpu.memory_space<vmem>>, vector<1x128xf32>
    %18 = vector.broadcast %17 : vector<1x128xf32> to vector<8x128xf32>
    %19 = arith.addf %16, %18 : vector<8x128xf32>
    %cst_11 = arith.constant 0.000000e+00 : f32
    %20 = vector.broadcast %cst_11 : f32 to vector<8x128xf32>
    %21 = arith.maximumf %19, %20 : vector<8x128xf32>
    %22 = arith.truncf %21 : vector<8x128xf32> to vector<8x128xbf16>
    %c0_12 = arith.constant 0 : index
    %c0_13 = arith.constant 0 : index
    %23 = vector.load %arg6[%c0_12, %c0_13] : memref<128x64xbf16, #tpu.memory_space<vmem>>, vector<128x64xbf16>
    %cst_14 = arith.constant dense<0.000000e+00> : vector<8x64xf32>
    %24 = tpu.matmul %22, %23, %cst_14 {dimension_numbers = #tpu.dot_dimension_numbers<[1], [0], [0], [1], [0, 0, 1, 1], [], []>} : vector<8x128xbf16>, vector<128x64xbf16>, vector<8x64xf32> -> vector<8x64xf32>
    %c0_15 = arith.constant 0 : index
    %c0_16 = arith.constant 0 : index
    %25 = vector.load %arg7[%c0_15, %c0_16] : memref<1x64xf32, #tpu.memory_space<vmem>>, vector<1x64xf32>
    %26 = vector.broadcast %25 : vector<1x64xf32> to vector<8x64xf32>
    %27 = arith.addf %24, %26 : vector<8x64xf32>
    %cst_17 = arith.constant 0.000000e+00 : f32
    %28 = vector.broadcast %cst_17 : f32 to vector<8x64xf32>
    %29 = arith.maximumf %27, %28 : vector<8x64xf32>
    %30 = arith.truncf %29 : vector<8x64xf32> to vector<8x64xbf16>
    %c0_18 = arith.constant 0 : index
    %c0_19 = arith.constant 0 : index
    %31 = vector.load %arg8[%c0_18, %c0_19] : memref<64x128xbf16, #tpu.memory_space<vmem>>, vector<64x128xbf16>
    %cst_20 = arith.constant dense<0.000000e+00> : vector<8x128xf32>
    %32 = tpu.matmul %30, %31, %cst_20 {dimension_numbers = #tpu.dot_dimension_numbers<[1], [0], [0], [1], [0, 0, 1, 1], [], []>} : vector<8x64xbf16>, vector<64x128xbf16>, vector<8x128xf32> -> vector<8x128xf32>
    %c0_21 = arith.constant 0 : index
    %c0_22 = arith.constant 0 : index
    %33 = vector.load %arg9[%c0_21, %c0_22] : memref<1x128xf32, #tpu.memory_space<vmem>>, vector<1x128xf32>
    %34 = vector.broadcast %33 : vector<1x128xf32> to vector<8x128xf32>
    %35 = arith.addf %32, %34 : vector<8x128xf32>
    %36 = arith.truncf %35 : vector<8x128xf32> to vector<8x128xbf16>
    %c0_23 = arith.constant 0 : index
    %c0_24 = arith.constant 0 : index
    %37 = vector.load %arg10[%c0_23, %c0_24] : memref<8x128xbf16, #tpu.memory_space<vmem>>, vector<8x128xbf16>
    tpu.vector_store %arg10[%c0_23, %c0_24], %36 {strides = array<i32>} : memref<8x128xbf16, #tpu.memory_space<vmem>>, vector<8x128xbf16>,
    return
  }
  func.func @transform_0(%arg0: i32) -> (i32, i32) {
    %c0_i32 = arith.constant 0 : i32
    %c0_i32_0 = arith.constant 0 : i32
    return %arg0, %c0_i32 : i32, i32
  }
  func.func @transform_1(%arg0: i32) -> (i32, i32) {
    %c0_i32 = arith.constant 0 : i32
    %c0_i32_0 = arith.constant 0 : i32
    %c0_i32_1 = arith.constant 0 : i32
    return %c0_i32, %c0_i32_0 : i32, i32
  }
  func.func @transform_2(%arg0: i32) -> (i32, i32) {
    %c0_i32 = arith.constant 0 : i32
    %c0_i32_0 = arith.constant 0 : i32
    %c0_i32_1 = arith.constant 0 : i32
    return %c0_i32, %c0_i32_0 : i32, i32
  }
  func.func @transform_3(%arg0: i32) -> (i32, i32) {
    %c0_i32 = arith.constant 0 : i32
    %c0_i32_0 = arith.constant 0 : i32
    %c0_i32_1 = arith.constant 0 : i32
    return %c0_i32, %c0_i32_0 : i32, i32
  }
  func.func @transform_4(%arg0: i32) -> (i32, i32) {
    %c0_i32 = arith.constant 0 : i32
    %c0_i32_0 = arith.constant 0 : i32
    %c0_i32_1 = arith.constant 0 : i32
    return %c0_i32, %c0_i32_0 : i32, i32
  }
  func.func @transform_5(%arg0: i32) -> (i32, i32) {
    %c0_i32 = arith.constant 0 : i32
    %c0_i32_0 = arith.constant 0 : i32
    %c0_i32_1 = arith.constant 0 : i32
    return %c0_i32, %c0_i32_0 : i32, i32
  }
  func.func @transform_6(%arg0: i32) -> (i32, i32) {
    %c0_i32 = arith.constant 0 : i32
    %c0_i32_0 = arith.constant 0 : i32
    %c0_i32_1 = arith.constant 0 : i32
    return %c0_i32, %c0_i32_0 : i32, i32
  }
  func.func @transform_7(%arg0: i32) -> (i32, i32) {
    %c0_i32 = arith.constant 0 : i32
    %c0_i32_0 = arith.constant 0 : i32
    %c0_i32_1 = arith.constant 0 : i32
    return %c0_i32, %c0_i32_0 : i32, i32
  }
  func.func @transform_8(%arg0: i32) -> (i32, i32) {
    %c0_i32 = arith.constant 0 : i32
    %c0_i32_0 = arith.constant 0 : i32
    %c0_i32_1 = arith.constant 0 : i32
    return %c0_i32, %c0_i32_0 : i32, i32
  }
  func.func @transform_9(%arg0: i32) -> (i32, i32) {
    %c0_i32 = arith.constant 0 : i32
    %c0_i32_0 = arith.constant 0 : i32
    return %arg0, %c0_i32 : i32, i32
  }
}

</mosaic_0001>

<llo_original>
// kernel: tpu_custom_call.1
$region0: #{tpu_custom_call.1}
  #allocation0 [shape = 'u32[]', space=smem, size = 0x4, offset = 0x4, fixed_abs, tag = 'smem constant byte address 0x4 - core index']
  #allocation1 [shape = 'u32[144,128]{1,0:T(1,128)}', space=vmem, size = 0x12000, scoped, tag = 'internal scratch']
  %s0 = inlined_call_operand.vmem [shape: bf16[8,40], index: 0, kind: input, shape index: {}]
  %s1 = inlined_call_operand.vmem [shape: bf16[40,512], index: 1, kind: input, shape index: {}]
  %s2 = inlined_call_operand.vmem [shape: f32[1,256], index: 2, kind: input, shape index: {}]
  %s3 = inlined_call_operand.hbm [shape: bf16[256,256], index: 3, kind: input, shape index: {}]
  %s4 = inlined_call_operand.vmem [shape: f32[1,128], index: 4, kind: input, shape index: {}]
  %s5 = inlined_call_operand.vmem [shape: bf16[128,64], index: 5, kind: input, shape index: {}]
  %s6 = inlined_call_operand.vmem [shape: f32[1,64], index: 6, kind: input, shape index: {}]
  %s7 = inlined_call_operand.hbm [shape: bf16[64,128], index: 7, kind: input, shape index: {}]
  %s8 = inlined_call_operand.vmem [shape: f32[1,128], index: 8, kind: input, shape index: {}]
  %s9 = inlined_call_operand.hbm [shape: bf16[8,128], index: 9, kind: output, shape index: {}]
  %s10 = sld [smem:[#allocation0]]
  $region54: #{tpu_custom_call.1} parent=0
    _
  %s12 = ssub.s32 1, %s10
  %s13 = scalar_select 0, %s12, %s10
  $region1: #{tpu_custom_call.1} parent=0
    #allocation2 [shape = 'u8[131072]{0}', space=vmem, size = 0x20000, scoped, tag = 'input window, operand 3, single buffered']
    #allocation3 [shape = 's32[1]{0}', space=sflag, size = 0x4, scoped, tag = 'scoped memory for tpu_custom_call.1']
    #allocation4 [shape = 's32[1]{0}', space=sflag, size = 0x4, scoped, tag = 'scoped memory for tpu_custom_call.1']
    #allocation5 [shape = 'u8[16384]{0}', space=vmem, size = 0x4000, scoped, tag = 'input window, operand 7, single buffered']
    #allocation6 [shape = 's32[1]{0}', space=sflag, size = 0x4, scoped, tag = 'scoped memory for tpu_custom_call.1']
    #allocation7 [shape = 'u8[2048]{0}', space=vmem, size = 0x800, scoped, tag = 'output window, operand 0, single buffered']
    %14 = vsyncpa [#allocation3], 0
    %15 = vsyncpa [#allocation6], 0
    %16 = vsyncpa [#allocation4], 0
    // Predicated region
    $region2: #{tpu_custom_call.1} parent=1 // pred_check
      _
    $region3: #{tpu_custom_call.1} parent=1 // pred_check_branch
      %18 = sbr.rel (0) target = $region5
    $region4: #{tpu_custom_call.1} parent=1 // pred_region
      _
    $region5: #{tpu_custom_call.1} parent=1 // pred_fallthru
      _
    // Predicated region
    $region6: #{tpu_custom_call.1} parent=1 // pred_check
      _
    $region7: #{tpu_custom_call.1} parent=1 // pred_check_branch
      %20 = sbr.rel (0) target = $region9
    $region8: #{tpu_custom_call.1} parent=1 // pred_region
      _
    $region9: #{tpu_custom_call.1} parent=1 // pred_fallthru
      _
    // Predicated region
    $region10: #{tpu_custom_call.1} parent=1 // pred_check
      _
    $region11: #{tpu_custom_call.1} parent=1 // pred_check_branch
      %22 = sbr.rel (0) target = $region13
    $region12: #{tpu_custom_call.1} parent=1 // pred_region
      _
    $region13: #{tpu_custom_call.1} parent=1 // pred_fallthru
      _
    // Predicated region
    $region14: #{tpu_custom_call.1} parent=1 // pred_check
      _
    $region15: #{tpu_custom_call.1} parent=1 // pred_check_branch
      %24 = sbr.rel (0) target = $region17
    $region16: #{tpu_custom_call.1} parent=1 // pred_region
      %s26 = ssub.s32 4096, 4096
      %27 = vsyncadd [#allocation3], %s26
      %s28 = sshll.u32 [#allocation2], 4
      %s29 = int_to_ptr.vmem [resolvable:$true] %s28
      %34 = dma.hbm_to_vmem [thread:$0]  %s3, 4096, %s29, [#allocation3], 128, 128, 8
    $region17: #{tpu_custom_call.1} parent=1 // pred_fallthru
      _
    // Predicated region
    $region18: #{tpu_custom_call.1} parent=1 // pred_check
      _
    $region19: #{tpu_custom_call.1} parent=1 // pred_check_branch
      %36 = sbr.rel (0) target = $region21
    $region20: #{tpu_custom_call.1} parent=1 // pred_region
      _
    $region21: #{tpu_custom_call.1} parent=1 // pred_fallthru
      _
    // Predicated region
    $region22: #{tpu_custom_call.1} parent=1 // pred_check
      _
    $region23: #{tpu_custom_call.1} parent=1 // pred_check_branch
      %38 = sbr.rel (0) target = $region25
    $region24: #{tpu_custom_call.1} parent=1 // pred_region
      _
    $region25: #{tpu_custom_call.1} parent=1 // pred_fallthru
      _
    // Predicated region
    $region26: #{tpu_custom_call.1} parent=1 // pred_check
      _
    $region27: #{tpu_custom_call.1} parent=1 // pred_check_branch
      %40 = sbr.rel (0) target = $region29
    $region28: #{tpu_custom_call.1} parent=1 // pred_region
      _
    $region29: #{tpu_custom_call.1} parent=1 // pred_fallthru
      _
    // Predicated region
    $region30: #{tpu_custom_call.1} parent=1 // pred_check
      _
    $region31: #{tpu_custom_call.1} parent=1 // pred_check_branch
      %42 = sbr.rel (0) target = $region33
    $region32: #{tpu_custom_call.1} parent=1 // pred_region
      %s44 = ssub.s32 512, 512
      %45 = vsyncadd [#allocation6], %s44
      %s46 = sshll.u32 [#allocation5], 4
      %s47 = int_to_ptr.vmem [resolvable:$true] %s46
      %52 = dma.hbm_to_vmem [thread:$0]  %s7, 512, %s47, [#allocation6], 64, 64, 4
    $region33: #{tpu_custom_call.1} parent=1 // pred_fallthru
      _
    // Predicated region
    $region34: #{tpu_custom_call.1} parent=1 // pred_check
      _
    $region35: #{tpu_custom_call.1} parent=1 // pred_check_branch
      %54 = sbr.rel (0) target = $region37
    $region36: #{tpu_custom_call.1} parent=1 // pred_region
      _
    $region37: #{tpu_custom_call.1} parent=1 // pred_fallthru
      _
    // Predicated region
    $region38: #{tpu_custom_call.1} parent=1 // pred_check
      _
    $region39: #{tpu_custom_call.1} parent=1 // pred_check_branch
      %56 = sbr.rel (0) target = $region41
    $region40: #{tpu_custom_call.1} parent=1 // pred_region
      %57 = dma.done [#allocation3], 4096
    $region41: #{tpu_custom_call.1} parent=1 // pred_fallthru
      _
    // Predicated region
    $region42: #{tpu_custom_call.1} parent=1 // pred_check
      _
    $region43: #{tpu_custom_call.1} parent=1 // pred_check_branch
      %59 = sbr.rel (0) target = $region45
    $region44: #{tpu_custom_call.1} parent=1 // pred_region
      %60 = dma.done [#allocation6], 512
    $region45: #{tpu_custom_call.1} parent=1 // pred_fallthru
      _
    %v62 = vld [vmem:[%s0] sm:$0xf]
    %v63 = vld [vmem:[%s1] sm:$0xff]
    %v64 = vld [vmem:[%s1 + $0x8] sm:$0xff]
    %v65 = vld [vmem:[%s1 + $0x10] sm:$0xff]
    %v66 = vld [vmem:[%s1 + $0x18] sm:$0xff]
    %v67 = vld [vmem:[%s1 + $0x20] sm:$0xff]
    %v68 = vld [vmem:[%s1 + $0x28] sm:$0xff]
    %v69 = vld [vmem:[%s1 + $0x30] sm:$0xff]
    %v70 = vld [vmem:[%s1 + $0x38] sm:$0xff]
    %v71 = vld [vmem:[%s1 + $0x40] sm:$0xff]
    %v72 = vld [vmem:[%s1 + $0x48] sm:$0xff]
    %v83 = vunpack.c.l.b16 %v63
    %v84 = vunpack.c.h.b16 %v63
    %v85 = vunpack.c.l.b16 %v64
    %v86 = vunpack.c.h.b16 %v64
    %v87 = vunpack.c.l.b16 %v65
    %v88 = vunpack.c.h.b16 %v65
    %v89 = vunpack.c.l.b16 %v66
    %v90 = vunpack.c.h.b16 %v66
    %v91 = vunpack.c.l.b16 %v67
    %v92 = vunpack.c.h.b16 %v67
    %v93 = vunpack.c.l.b16 %v68
    %v94 = vunpack.c.h.b16 %v68
    %v95 = vunpack.c.l.b16 %v69
    %v96 = vunpack.c.h.b16 %v69
    %v97 = vunpack.c.l.b16 %v70
    %v98 = vunpack.c.h.b16 %v70
    %v99 = vunpack.c.l.b16 %v71
    %v100 = vunpack.c.h.b16 %v71
    %v101 = vunpack.c.l.b16 %v72
    %v102 = vunpack.c.h.b16 %v72
    %v103 = vpack.c.b16 %v87, %v83
    %v104 = vpack.c.b16 %v88, %v84
    %v105 = vpack.c.b16 %v89, %v85
    %v106 = vpack.c.b16 %v90, %v86
    %v107 = vpack.c.b16 %v95, %v91
    %v108 = vpack.c.b16 %v96, %v92
    %v109 = vpack.c.b16 %v97, %v93
    %v110 = vpack.c.b16 %v98, %v94
    %v111 = vpack.c.b16 %v99, %v99
    %v112 = vpack.c.b16 %v100, %v100
    %v113 = vpack.c.b16 %v101, %v101
    %v114 = vpack.c.b16 %v102, %v102
    %vm123 = vcmask 326656
    %v125 = vsel %vm123, %v62, 0
    %vm127 = vcmask 1043456
    %v129 = vsel %vm127, %v111, 0
    %v132 = vsel %vm127, %v112, 0
    %v135 = vsel %vm127, %v113, 0
    %v138 = vsel %vm127, %v114, 0
    %140 = vmatprep.subr.bf16.mxu0 0
    %141 = vmatpush1.bf16.msra.mxu0 0
    %142 = vmatprep.subr.bf16.mxu0 0
    %143 = vmatpush1.bf16.msra.mxu0 0
    %144 = vmatprep.subr.bf16.mxu0 0
    %145 = vmatpush1.bf16.msra.mxu0 0
    %146 = vmatprep.subr.bf16.mxu0 0
    %147 = vmatpush1.bf16.msra.mxu0 0
    %148 = vmatprep.subr.bf16.mxu0 0
    %149 = vmatpush1.bf16.msra.mxu0 0
    %150 = vmatprep.subr.bf16.mxu0 %v132
    %151 = vmatpush1.bf16.msra.mxu0 %v129
    %152 = vmatprep.subr.bf16.mxu0 %v108
    %153 = vmatpush1.bf16.msra.mxu0 %v107
    %154 = vmatprep.subr.bf16.mxu0 %v104
    %155 = vmatpush1.bf16.msra.mxu0 %v103
    %156 = vmatprep.subr.bf16.mxu0 0
    %157 = vmatpush2.bf16.msra.mxu0 0
    %158 = vmatprep.subr.bf16.mxu0 0
    %159 = vmatpush2.bf16.msra.mxu0 0
    %160 = vmatprep.subr.bf16.mxu0 0
    %161 = vmatpush2.bf16.msra.mxu0 0
    %162 = vmatprep.subr.bf16.mxu0 0
    %163 = vmatpush2.bf16.msra.mxu0 0
    %164 = vmatprep.subr.bf16.mxu0 0
    %165 = vmatpush2.bf16.msra.mxu0 0
    %166 = vmatprep.subr.bf16.mxu0 0
    %167 = vmatpush2.bf16.msra.mxu0 0
    %168 = vmatprep.subr.bf16.mxu0 0
    %169 = vmatpush2.bf16.msra.mxu0 0
    %170 = vmatprep.subr.bf16.mxu0 0
    %171 = vmatpush2.bf16.msra.mxu0 0
    %172 = vmatprep.mubr.bf16.mxu0 0
    %173 = vmatmul.mubr.bf16.gmra.mxu0 %v125
    %v174 = vpop.f32.mrf.mxu0
    %v175 = vadd.f32 0.0, %v174
    %v176 = vpop.f32.mrf.mxu0
    %v177 = vadd.f32 0.0, %v176
    %v178 = vpop.f32.mrf.mxu0
    %v179 = vpop.f32.mrf.mxu0
    %180 = vdwg.mxu0
    %181 = vmatprep.subr.bf16.mxu0 0
    %182 = vmatpush1.bf16.msra.mxu0 0
    %183 = vmatprep.subr.bf16.mxu0 0
    %184 = vmatpush1.bf16.msra.mxu0 0
    %185 = vmatprep.subr.bf16.mxu0 0
    %186 = vmatpush1.bf16.msra.mxu0 0
    %187 = vmatprep.subr.bf16.mxu0 0
    %188 = vmatpush1.bf16.msra.mxu0 0
    %189 = vmatprep.subr.bf16.mxu0 0
    %190 = vmatpush1.bf16.msra.mxu0 0
    %191 = vmatprep.subr.bf16.mxu0 %v138
    %192 = vmatpush1.bf16.msra.mxu0 %v135
    %193 = vmatprep.subr.bf16.mxu0 %v110
    %194 = vmatpush1.bf16.msra.mxu0 %v109
    %195 = vmatprep.subr.bf16.mxu0 %v106
    %196 = vmatpush1.bf16.msra.mxu0 %v105
    %197 = vmatprep.subr.bf16.mxu0 0
    %198 = vmatpush2.bf16.msra.mxu0 0
    %199 = vmatprep.subr.bf16.mxu0 0
    %200 = vmatpush2.bf16.msra.mxu0 0
    %201 = vmatprep.subr.bf16.mxu0 0
    %202 = vmatpush2.bf16.msra.mxu0 0
    %203 = vmatprep.subr.bf16.mxu0 0
    %204 = vmatpush2.bf16.msra.mxu0 0
    %205 = vmatprep.subr.bf16.mxu0 0
    %206 = vmatpush2.bf16.msra.mxu0 0
    %207 = vmatprep.subr.bf16.mxu0 0
    %208 = vmatpush2.bf16.msra.mxu0 0
    %209 = vmatprep.subr.bf16.mxu0 0
    %210 = vmatpush2.bf16.msra.mxu0 0
    %211 = vmatprep.subr.bf16.mxu0 0
    %212 = vmatpush2.bf16.msra.mxu0 0
    %213 = vmatprep.mubr.bf16.mxu0 0
    %214 = vmatmul.mubr.bf16.gmra.mxu0 %v125
    %v215 = vpop.f32.mrf.mxu0
    %v216 = vadd.f32 0.0, %v215
    %v217 = vpop.f32.mrf.mxu0
    %v218 = vadd.f32 0.0, %v217
    %v219 = vpop.f32.mrf.mxu0
    %v220 = vpop.f32.mrf.mxu0
    %221 = vdwg.mxu0
    %v222 = vmax.f32 %v175, %v216
    %v223 = vmax.f32 %v177, %v218
    %v224 = vld [vmem:[%s2] sm:$0x3]
    %v226 = vlaneseq
    %v227 = vshrl.u32 %v226, 7
    %v228 = vsub.s32 0, %v227
    %v229 = vrot.slane %v224, %v228
    %v230 = vlaneseq
    %v231 = vshrl.u32 %v230, 7
    %v232 = vsub.s32 1, %v231
    %v233 = vrot.slane %v224, %v232
    %v236 = vadd.f32 %v222, %v229
    %v237 = vadd.f32 %v223, %v233
    %v238 = vmax.f32 %v236, 0.0
    %v239 = vmax.f32 %v237, 0.0
    %v240 = vpack.c.bf16 %v238, %v238
    %v241 = vpack.c.bf16 %v239, %v239
    %v242 = vld [vmem:[#allocation2] sm:$0xff]
    %v243 = vld [vmem:[#allocation2 + $0x8] sm:$0xff]
    %v244 = vld [vmem:[#allocation2 + $0x10] sm:$0xff]
    %v245 = vld [vmem:[#allocation2 + $0x18] sm:$0xff]
    %v246 = vld [vmem:[#allocation2 + $0x20] sm:$0xff]
    %v247 = vld [vmem:[#allocation2 + $0x28] sm:$0xff]
    %v248 = vld [vmem:[#allocation2 + $0x30] sm:$0xff]
    %v249 = vld [vmem:[#allocation2 + $0x38] sm:$0xff]
    %v250 = vld [vmem:[#allocation2 + $0x40] sm:$0xff]
    %v251 = vld [vmem:[#allocation2 + $0x48] sm:$0xff]
    %v252 = vld [vmem:[#allocation2 + $0x50] sm:$0xff]
    %v253 = vld [vmem:[#allocation2 + $0x58] sm:$0xff]
    %v254 = vld [vmem:[#allocation2 + $0x60] sm:$0xff]
    %v255 = vld [vmem:[#allocation2 + $0x68] sm:$0xff]
    %v256 = vld [vmem:[#allocation2 + $0x70] sm:$0xff]
    %v257 = vld [vmem:[#allocation2 + $0x78] sm:$0xff]
    %v258 = vld [vmem:[#allocation2 + $0x80] sm:$0xff]
    %v259 = vld [vmem:[#allocation2 + $0x88] sm:$0xff]
    %v260 = vld [vmem:[#allocation2 + $0x90] sm:$0xff]
    %v261 = vld [vmem:[#allocation2 + $0x98] sm:$0xff]
    %v262 = vld [vmem:[#allocation2 + $0xa0] sm:$0xff]
    %v263 = vld [vmem:[#allocation2 + $0xa8] sm:$0xff]
    %v264 = vld [vmem:[#allocation2 + $0xb0] sm:$0xff]
    %v265 = vld [vmem:[#allocation2 + $0xb8] sm:$0xff]
    %v266 = vld [vmem:[#allocation2 + $0xc0] sm:$0xff]
    %v267 = vld [vmem:[#allocation2 + $0xc8] sm:$0xff]
    %v268 = vld [vmem:[#allocation2 + $0xd0] sm:$0xff]
    %v269 = vld [vmem:[#allocation2 + $0xd8] sm:$0xff]
    %v270 = vld [vmem:[#allocation2 + $0xe0] sm:$0xff]
    %v271 = vld [vmem:[#allocation2 + $0xe8] sm:$0xff]
    %v272 = vld [vmem:[#allocation2 + $0xf0] sm:$0xff]
    %v273 = vld [vmem:[#allocation2 + $0xf8] sm:$0xff]
    %v306 = vunpack.c.l.b16 %v242
    %v307 = vunpack.c.h.b16 %v242
    %v308 = vunpack.c.l.b16 %v243
    %v309 = vunpack.c.h.b16 %v243
    %v310 = vunpack.c.l.b16 %v244
    %v311 = vunpack.c.h.b16 %v244
    %v312 = vunpack.c.l.b16 %v245
    %v313 = vunpack.c.h.b16 %v245
    %v314 = vunpack.c.l.b16 %v246
    %v315 = vunpack.c.h.b16 %v246
    %v316 = vunpack.c.l.b16 %v247
    %v317 = vunpack.c.h.b16 %v247
    %v318 = vunpack.c.l.b16 %v248
    %v319 = vunpack.c.h.b16 %v248
    %v320 = vunpack.c.l.b16 %v249
    %v321 = vunpack.c.h.b16 %v249
    %v322 = vunpack.c.l.b16 %v250
    %v323 = vunpack.c.h.b16 %v250
    %v324 = vunpack.c.l.b16 %v251
    %v325 = vunpack.c.h.b16 %v251
    %v326 = vunpack.c.l.b16 %v252
    %v327 = vunpack.c.h.b16 %v252
    %v328 = vunpack.c.l.b16 %v253
    %v329 = vunpack.c.h.b16 %v253
    %v330 = vunpack.c.l.b16 %v254
    %v331 = vunpack.c.h.b16 %v254
    %v332 = vunpack.c.l.b16 %v255
    %v333 = vunpack.c.h.b16 %v255
    %v334 = vunpack.c.l.b16 %v256
    %v335 = vunpack.c.h.b16 %v256
    %v336 = vunpack.c.l.b16 %v257
    %v337 = vunpack.c.h.b16 %v257
    %v338 = vunpack.c.l.b16 %v258
    %v339 = vunpack.c.h.b16 %v258
    %v340 = vunpack.c.l.b16 %v259
    %v341 = vunpack.c.h.b16 %v259
    %v342 = vunpack.c.l.b16 %v260
    %v343 = vunpack.c.h.b16 %v260
    %v344 = vunpack.c.l.b16 %v261
    %v345 = vunpack.c.h.b16 %v261
    %v346 = vunpack.c.l.b16 %v262
    %v347 = vunpack.c.h.b16 %v262
    %v348 = vunpack.c.l.b16 %v263
    %v349 = vunpack.c.h.b16 %v263
    %v350 = vunpack.c.l.b16 %v264
    %v351 = vunpack.c.h.b16 %v264
    %v352 = vunpack.c.l.b16 %v265
    %v353 = vunpack.c.h.b16 %v265
    %v354 = vunpack.c.l.b16 %v266
    %v355 = vunpack.c.h.b16 %v266
    %v356 = vunpack.c.l.b16 %v267
    %v357 = vunpack.c.h.b16 %v267
    %v358 = vunpack.c.l.b16 %v268
    %v359 = vunpack.c.h.b16 %v268
    %v360 = vunpack.c.l.b16 %v269
    %v361 = vunpack.c.h.b16 %v269
    %v362 = vunpack.c.l.b16 %v270
    %v363 = vunpack.c.h.b16 %v270
    %v364 = vunpack.c.l.b16 %v271
    %v365 = vunpack.c.h.b16 %v271
    %v366 = vunpack.c.l.b16 %v272
    %v367 = vunpack.c.h.b16 %v272
    %v368 = vunpack.c.l.b16 %v273
    %v369 = vunpack.c.h.b16 %v273
    %v370 = vpack.c.b16 %v308, %v306
    %v371 = vpack.c.b16 %v309, %v307
    %v372 = vpack.c.b16 %v312, %v310
    %v373 = vpack.c.b16 %v313, %v311
    %v374 = vpack.c.b16 %v316, %v314
    %v375 = vpack.c.b16 %v317, %v315
    %v376 = vpack.c.b16 %v320, %v318
    %v377 = vpack.c.b16 %v321, %v319
    %v378 = vpack.c.b16 %v324, %v322
    %v379 = vpack.c.b16 %v325, %v323
    %v380 = vpack.c.b16 %v328, %v326
    %v381 = vpack.c.b16 %v329, %v327
    %v382 = vpack.c.b16 %v332, %v330
    %v383 = vpack.c.b16 %v333, %v331
    %v384 = vpack.c.b16 %v336, %v334
    %v385 = vpack.c.b16 %v337, %v335
    %v386 = vpack.c.b16 %v340, %v338
    %v387 = vpack.c.b16 %v341, %v339
    %v388 = vpack.c.b16 %v344, %v342
    %v389 = vpack.c.b16 %v345, %v343
    %v390 = vpack.c.b16 %v348, %v346
    %v391 = vpack.c.b16 %v349, %v347
    %v392 = vpack.c.b16 %v352, %v350
    %v393 = vpack.c.b16 %v353, %v351
    %v394 = vpack.c.b16 %v356, %v354
    %v395 = vpack.c.b16 %v357, %v355
    %v396 = vpack.c.b16 %v360, %v358
    %v397 = vpack.c.b16 %v361, %v359
    %v398 = vpack.c.b16 %v364, %v362
    %v399 = vpack.c.b16 %v365, %v363
    %v400 = vpack.c.b16 %v368, %v366
    %v401 = vpack.c.b16 %v369, %v367
    %434 = vmatprep.subr.bf16.mxu0 %v385
    %435 = vmatpush1.bf16.msra.mxu0 %v384
    %436 = vmatprep.subr.bf16.mxu0 %v383
    %437 = vmatpush1.bf16.msra.mxu0 %v382
    %438 = vmatprep.subr.bf16.mxu0 %v381
    %439 = vmatpush1.bf16.msra.mxu0 %v380
    %440 = vmatprep.subr.bf16.mxu0 %v379
    %441 = vmatpush1.bf16.msra.mxu0 %v378
    %442 = vmatprep.subr.bf16.mxu0 %v377
    %443 = vmatpush1.bf16.msra.mxu0 %v376
    %444 = vmatprep.subr.bf16.mxu0 %v375
    %445 = vmatpush1.bf16.msra.mxu0 %v374
    %446 = vmatprep.subr.bf16.mxu0 %v373
    %447 = vmatpush1.bf16.msra.mxu0 %v372
    %448 = vmatprep.subr.bf16.mxu0 %v371
    %449 = vmatpush1.bf16.msra.mxu0 %v370
    %450 = vmatprep.subr.bf16.mxu0 %v401
    %451 = vmatpush2.bf16.msra.mxu0 %v400
    %452 = vmatprep.subr.bf16.mxu0 %v399
    %453 = vmatpush2.bf16.msra.mxu0 %v398
    %454 = vmatprep.subr.bf16.mxu0 %v397
    %455 = vmatpush2.bf16.msra.mxu0 %v396
    %456 = vmatprep.subr.bf16.mxu0 %v395
    %457 = vmatpush2.bf16.msra.mxu0 %v394
    %458 = vmatprep.subr.bf16.mxu0 %v393
    %459 = vmatpush2.bf16.msra.mxu0 %v392
    %460 = vmatprep.subr.bf16.mxu0 %v391
    %461 = vmatpush2.bf16.msra.mxu0 %v390
    %462 = vmatprep.subr.bf16.mxu0 %v389
    %463 = vmatpush2.bf16.msra.mxu0 %v388
    %464 = vmatprep.subr.bf16.mxu0 %v387
    %465 = vmatpush2.bf16.msra.mxu0 %v386
    %466 = vmatprep.mubr.bf16.mxu0 %v241
    %467 = vmatmul.mubr.bf16.gmra.mxu0 %v240
    %v468 = vpop.f32.mrf.mxu0
    %v469 = vadd.f32 0.0, %v468
    %v470 = vpop.f32.mrf.mxu0
    %v471 = vadd.f32 0.0, %v470
    %v472 = vpop.f32.mrf.mxu0
    %v473 = vpop.f32.mrf.mxu0
    %474 = vdwg.mxu0
    %v475 = vmax.f32 %v469, %v471
    %v476 = vld [vmem:[%s4] sm:$0x1]
    %v478 = vlaneseq
    %v479 = vshrl.u32 %v478, 7
    %v480 = vsub.s32 0, %v479
    %v481 = vrot.slane %v476, %v480
    %v483 = vadd.f32 %v475, %v481
    %v484 = vmax.f32 %v483, 0.0
    %v485 = vpack.c.bf16 %v484, %v484
    %v486 = vld [vmem:[%s5] sm:$0xf]
    %v487 = vld [vmem:[%s5 + $0x4] sm:$0xf]
    %v488 = vld [vmem:[%s5 + $0x8] sm:$0xf]
    %v489 = vld [vmem:[%s5 + $0xc] sm:$0xf]
    %v490 = vld [vmem:[%s5 + $0x10] sm:$0xf]
    %v491 = vld [vmem:[%s5 + $0x14] sm:$0xf]
    %v492 = vld [vmem:[%s5 + $0x18] sm:$0xf]
    %v493 = vld [vmem:[%s5 + $0x1c] sm:$0xf]
    %v494 = vld [vmem:[%s5 + $0x20] sm:$0xf]
    %v495 = vld [vmem:[%s5 + $0x24] sm:$0xf]
    %v496 = vld [vmem:[%s5 + $0x28] sm:$0xf]
    %v497 = vld [vmem:[%s5 + $0x2c] sm:$0xf]
    %v498 = vld [vmem:[%s5 + $0x30] sm:$0xf]
    %v499 = vld [vmem:[%s5 + $0x34] sm:$0xf]
    %v500 = vld [vmem:[%s5 + $0x38] sm:$0xf]
    %v501 = vld [vmem:[%s5 + $0x3c] sm:$0xf]
    %v502 = vld [vmem:[%s6] sm:$0x1]
    %v504 = vlaneseq
    %v505 = vshrl.u32 %v504, 7
    %v506 = vsub.s32 0, %v505
    %v507 = vrot.slane %v502, %v506
    %v525 = vunpack.c.l.b16 %v486
    %v526 = vunpack.c.l.b16 %v487
    %v527 = vunpack.c.l.b16 %v488
    %v528 = vunpack.c.l.b16 %v489
    %v529 = vunpack.c.l.b16 %v490
    %v530 = vunpack.c.l.b16 %v491
    %v531 = vunpack.c.l.b16 %v492
    %v532 = vunpack.c.l.b16 %v493
    %v533 = vunpack.c.l.b16 %v494
    %v534 = vunpack.c.l.b16 %v495
    %v535 = vunpack.c.l.b16 %v496
    %v536 = vunpack.c.l.b16 %v497
    %v537 = vunpack.c.l.b16 %v498
    %v538 = vunpack.c.l.b16 %v499
    %v539 = vunpack.c.l.b16 %v500
    %v540 = vunpack.c.l.b16 %v501
    %v541 = vpack.c.b16 %v526, %v525
    %v542 = vpack.c.b16 %v528, %v527
    %v543 = vpack.c.b16 %v530, %v529
    %v544 = vpack.c.b16 %v532, %v531
    %v545 = vpack.c.b16 %v534, %v533
    %v546 = vpack.c.b16 %v536, %v535
    %v547 = vpack.c.b16 %v538, %v537
    %v548 = vpack.c.b16 %v540, %v539
    %557 = vmatprep.subr.bf16.mxu0 0
    %558 = vmatpush1.bf16.msra.mxu0 %v548
    %559 = vmatprep.subr.bf16.mxu0 0
    %560 = vmatpush1.bf16.msra.mxu0 %v547
    %561 = vmatprep.subr.bf16.mxu0 0
    %562 = vmatpush1.bf16.msra.mxu0 %v546
    %563 = vmatprep.subr.bf16.mxu0 0
    %564 = vmatpush1.bf16.msra.mxu0 %v545
    %565 = vmatprep.subr.bf16.mxu0 0
    %566 = vmatpush1.bf16.msra.mxu0 %v544
    %567 = vmatprep.subr.bf16.mxu0 0
    %568 = vmatpush1.bf16.msra.mxu0 %v543
    %569 = vmatprep.subr.bf16.mxu0 0
    %570 = vmatpush1.bf16.msra.mxu0 %v542
    %571 = vmatprep.subr.bf16.mxu0 0
    %572 = vmatpush1.bf16.msra.mxu0 %v541
    %573 = vmatprep.subr.bf16.mxu0 0
    %574 = vmatpush2.bf16.msra.mxu0 0
    %575 = vmatprep.subr.bf16.mxu0 0
    %576 = vmatpush2.bf16.msra.mxu0 0
    %577 = vmatprep.subr.bf16.mxu0 0
    %578 = vmatpush2.bf16.msra.mxu0 0
    %579 = vmatprep.subr.bf16.mxu0 0
    %580 = vmatpush2.bf16.msra.mxu0 0
    %581 = vmatprep.subr.bf16.mxu0 0
    %582 = vmatpush2.bf16.msra.mxu0 0
    %583 = vmatprep.subr.bf16.mxu0 0
    %584 = vmatpush2.bf16.msra.mxu0 0
    %585 = vmatprep.subr.bf16.mxu0 0
    %586 = vmatpush2.bf16.msra.mxu0 0
    %587 = vmatprep.subr.bf16.mxu0 0
    %588 = vmatpush2.bf16.msra.mxu0 0
    %589 = vmatprep.mubr.bf16.mxu0 0
    %590 = vmatmul.mubr.bf16.gmra.mxu0 %v485
    %v591 = vpop.f32.mrf.mxu0
    %v592 = vadd.f32 %v507, %v591
    %v593 = vpop.f32.mrf.mxu0
    %v594 = vpop.f32.mrf.mxu0
    %v595 = vpop.f32.mrf.mxu0
    %596 = vdwg.mxu0
    %v597 = vmax.f32 %v592, 0.0
    %v598 = vpack.c.bf16 %v597, %v597
    %v599 = vld [vmem:[#allocation5] sm:$0xf]
    %v600 = vld [vmem:[#allocation5 + $0x4] sm:$0xf]
    %v601 = vld [vmem:[#allocation5 + $0x8] sm:$0xf]
    %v602 = vld [vmem:[#allocation5 + $0xc] sm:$0xf]
    %v603 = vld [vmem:[#allocation5 + $0x10] sm:$0xf]
    %v604 = vld [vmem:[#allocation5 + $0x14] sm:$0xf]
    %v605 = vld [vmem:[#allocation5 + $0x18] sm:$0xf]
    %v606 = vld [vmem:[#allocation5 + $0x1c] sm:$0xf]
    %v607 = vld [vmem:[%s8] sm:$0x1]
    %v609 = vlaneseq
    %v610 = vshrl.u32 %v609, 7
    %v611 = vsub.s32 0, %v610
    %v612 = vrot.slane %v607, %v611
    %v622 = vunpack.c.l.b16 %v599
    %v623 = vunpack.c.l.b16 %v600
    %v624 = vunpack.c.l.b16 %v601
    %v625 = vunpack.c.l.b16 %v602
    %v626 = vunpack.c.l.b16 %v603
    %v627 = vunpack.c.l.b16 %v604
    %v628 = vunpack.c.l.b16 %v605
    %v629 = vunpack.c.l.b16 %v606
    %v630 = vpack.c.b16 %v623, %v622
    %v631 = vpack.c.b16 %v625, %v624
    %v632 = vpack.c.b16 %v627, %v626
    %v633 = vpack.c.b16 %v629, %v628
    %vm638 = vcmask 523264
    %v640 = vsel %vm638, %v598, 0
    %642 = vmatprep.subr.bf16.mxu0 0
    %643 = vmatpush1.bf16.msra.mxu0 0
    %644 = vmatprep.subr.bf16.mxu0 0
    %645 = vmatpush1.bf16.msra.mxu0 0
    %646 = vmatprep.subr.bf16.mxu0 0
    %647 = vmatpush1.bf16.msra.mxu0 0
    %648 = vmatprep.subr.bf16.mxu0 0
    %649 = vmatpush1.bf16.msra.mxu0 0
    %650 = vmatprep.subr.bf16.mxu0 0
    %651 = vmatpush1.bf16.msra.mxu0 %v633
    %652 = vmatprep.subr.bf16.mxu0 0
    %653 = vmatpush1.bf16.msra.mxu0 %v632
    %654 = vmatprep.subr.bf16.mxu0 0
    %655 = vmatpush1.bf16.msra.mxu0 %v631
    %656 = vmatprep.subr.bf16.mxu0 0
    %657 = vmatpush1.bf16.msra.mxu0 %v630
    %658 = vmatprep.subr.bf16.mxu0 0
    %659 = vmatpush2.bf16.msra.mxu0 0
    %660 = vmatprep.subr.bf16.mxu0 0
    %661 = vmatpush2.bf16.msra.mxu0 0
    %662 = vmatprep.subr.bf16.mxu0 0
    %663 = vmatpush2.bf16.msra.mxu0 0
    %664 = vmatprep.subr.bf16.mxu0 0
    %665 = vmatpush2.bf16.msra.mxu0 0
    %666 = vmatprep.subr.bf16.mxu0 0
    %667 = vmatpush2.bf16.msra.mxu0 0
    %668 = vmatprep.subr.bf16.mxu0 0
    %669 = vmatpush2.bf16.msra.mxu0 0
    %670 = vmatprep.subr.bf16.mxu0 0
    %671 = vmatpush2.bf16.msra.mxu0 0
    %672 = vmatprep.subr.bf16.mxu0 0
    %673 = vmatpush2.bf16.msra.mxu0 0
    %674 = vmatprep.mubr.bf16.mxu0 0
    %675 = vmatmul.mubr.bf16.gmra.mxu0 %v640
    %v676 = vpop.f32.mrf.mxu0
    %v677 = vadd.f32 %v612, %v676
    %v678 = vpop.f32.mrf.mxu0
    %v679 = vpop.f32.mrf.mxu0
    %v680 = vpop.f32.mrf.mxu0
    %681 = vdwg.mxu0
    %v682 = vpack.c.bf16 %v677, %v677
    %683 = vst [vmem:[#allocation7] sm:$0xf] %v682
    // Predicated region
    $region46: #{tpu_custom_call.1} parent=1 // pred_check
      _
    $region47: #{tpu_custom_call.1} parent=1 // pred_check_branch
      %685 = sbr.rel (0) target = $region49
    $region48: #{tpu_custom_call.1} parent=1 // pred_region
      %s687 = ssub.s32 64, 64
      %688 = vsyncadd [#allocation4], %s687
      %s690 = sshll.u32 [#allocation7], 4
      %s691 = int_to_ptr.vmem [resolvable:$true] %s690
      %693 = dma.vmem_to_hbm [thread:$0]  %s691, 64, %s9, [#allocation4]
    $region49: #{tpu_custom_call.1} parent=1 // pred_fallthru
      _
    // Predicated region
    $region50: #{tpu_custom_call.1} parent=1 // pred_check
      _
    $region51: #{tpu_custom_call.1} parent=1 // pred_check_branch
      %695 = sbr.rel (0) target = $region53
    $region52: #{tpu_custom_call.1} parent=1 // pred_region
      %696 = dma.done [#allocation4], 64
    $region53: #{tpu_custom_call.1} parent=1 // pred_fallthru
      _
    %697 = vsyncpa [#allocation3], 1
    %698 = vsyncpa [#allocation6], 1
    %699 = vsyncpa [#allocation4], 1

</llo_original>
